<compile_context>
chip_gen: v7x
topology: tpu7x:2x2x1
jax: 0.10.0
libtpu: 0.0.40
codegen_flags: <defaults>
</compile_context>

<pallas_src>
import math

import jax
import jax.numpy as jnp
from jax import lax
from jax.experimental import pallas as pl
from jax.experimental.pallas import tpu as pltpu

# ---- static model dimensions (consistent with the module defaults) ----
BS = 2            # batch size
S_TCR = 8         # TCR beta-chain sequence length
S_PEP = 8         # peptide sequence length
FIN_TCR = 5       # Input_embedding initial_dim
FIN_PEP = 5       # encoderpMHC_in_dim
D = 32            # hidden/out dim
H_NUM = 2         # attention heads
H_SIZE = D // H_NUM
HEAD_H1 = 128
HEAD_H2 = 64
NEG = -1000000000000000.0   # -1e15 additive mask, as in the PyTorch code
B2 = 2 * BS                 # stacked batch: [real TCR pairs, background TCR pairs]

MM_DT = jnp.bfloat16        # MXU input dtype (f32 accumulation)


# --------------------------- in-kernel helpers ---------------------------

def _mm(a, b):
    """2-D matmul, bf16 MXU inputs, f32 accumulation."""
    return jnp.dot(a.astype(MM_DT), b.astype(MM_DT),
                   preferred_element_type=jnp.float32)


def _bmm_qk(q, k):
    """(B,Q,d) x (B,K,d) -> (B,Q,K), batched over the leading dim."""
    return jnp.einsum('bqd,bkd->bqk', q.astype(MM_DT), k.astype(MM_DT),
                      preferred_element_type=jnp.float32)


def _bmm_pv(p, v):
    """(B,Q,K) x (B,K,d) -> (B,Q,d), batched over the leading dim."""
    return jnp.einsum('bqk,bkd->bqd', p.astype(MM_DT), v.astype(MM_DT),
                      preferred_element_type=jnp.float32)


def _layernorm(x, gamma, beta, eps=1e-5):
    mu = jnp.mean(x, axis=-1, keepdims=True)
    var = jnp.mean((x - mu) ** 2, axis=-1, keepdims=True)
    return (x - mu) * lax.rsqrt(var + eps) * gamma + beta


def _softmax(x):
    m = jnp.max(x, axis=-1, keepdims=True)
    e = jnp.exp(x - m)
    return e * pl.reciprocal(jnp.sum(e, axis=-1, keepdims=True), approx=True)


# TODO(synk): torch.nn.GELU defaults to the exact erf formulation; the tanh
# approximation is used here (numerically very close).
def _gelu(x):
    return 0.5 * x * (1.0 + jnp.tanh(0.7978845608028654 * (x + 0.044715 * x * x * x)))


def _encoder_block(hq2, hkv2, neg_k1, bsz, s_q, s_kv, p):
    """Transformer encoder block (attention + FFN + 2x LN) over a stacked batch.

    hq2:  (bsz*s_q, D)  flattened queries (row-major by batch)
    hkv2: (bsz*s_kv, D) flattened keys/values
    neg_k1: (bsz, s_kv, 1) additive key mask (-1e15 on padded keys, 0 elsewhere);
            folded into the score matmul as an extra constant feature column.
    """
    (wq, bq, wkv, bkv, wo, bo, g1, be1, wi, bi, w2, b2, g2, be2) = p
    scale = 1.0 / math.sqrt(H_SIZE)
    q = (_mm(hq2, wq[...]) + bq[...]) * scale            # scale folded into Q once
    kv = _mm(hkv2, wkv[...]) + bkv[...]                  # packed K,V projection
    q3 = q.reshape(bsz, s_q, D)
    k3 = kv[:, :D].reshape(bsz, s_kv, D)
    v3 = kv[:, D:].reshape(bsz, s_kv, D)
    ones_q = jnp.ones((bsz, s_q, 1), jnp.float32)

    ctx_heads = []
    for h in range(H_NUM):
        sl = slice(h * H_SIZE, (h + 1) * H_SIZE)
        # Fold the additive key mask into the score matmul:
        # [q_h | 1] . [k_h | neg]^T = q_h.k_h / sqrt(hs) + (-1e15 on padded keys)
        qh = jnp.concatenate([q3[..., sl], ones_q], axis=-1)
        kh = jnp.concatenate([k3[..., sl], neg_k1], axis=-1)
        s = _bmm_qk(qh, kh)                              # (bsz, s_q, s_kv)
        ctx_heads.append(_bmm_pv(_softmax(s), v3[..., sl]))
    ctx2 = jnp.concatenate(ctx_heads, axis=-1).reshape(bsz * s_q, D)

    attn = _mm(ctx2, wo[...]) + bo[...]
    h1 = _layernorm(attn + hq2, g1[...], be1[...])
    inter = _gelu(_mm(h1, wi[...]) + bi[...])
    return _layernorm(_mm(inter, w2[...]) + b2[...] + h1, g2[...], be2[...])


# ------------------------------- fused kernel ------------------------------

def fused_kernel(*refs):
    (x_tcr_ref, x_bg_ref, x_pep_ref,                                   # 3  data
     e_w, e_b, e_g, e_be,                                              # 4  Input_embedding
     b_wq, b_bq, b_wkv, b_bkv, b_wo, b_bo, b_g1, b_be1,
     b_wi, b_bi, b_w2, b_b2, b_g2, b_be2,                              # 14 Self_attention_encoder
     f_wq, f_bq, f_wkv, f_bkv, f_wo, f_bo, f_g1, f_be1,
     f_wi, f_bi, f_w2, f_b2, f_g2, f_be2,                              # 14 Cross_attention_encoder
     l_wih1, l_whh1, l_b1, l_wih2, l_whh2, l_b2, l_g, l_be,            # 8  Encoder_pMHC LSTM
     p_w, p_b,                                                         # 2  Attention_pooler
     h_w1, h_b1, h_w2, h_b2, h_w3) = refs[:-1]                         # 5  ptm head
    o_ref = refs[-1]

    # ---- stack real + background TCRs so the TCR path runs once over 2*BS ----
    x4 = jnp.concatenate([x_tcr_ref[...], x_bg_ref[...]], axis=0)      # (B2, S_TCR, F)
    pad_t = jnp.sum(jnp.abs(x4), axis=-1, keepdims=True) == 0.0        # padded rows
    neg_t = jnp.where(pad_t, NEG, 0.0).astype(jnp.float32)             # (B2, S_TCR, 1)

    # ---- Input_embedding + Self_attention_encoder (TCR beta chain) -----------
    x2 = x4.reshape(B2 * S_TCR, FIN_TCR)
    emb = _layernorm(_mm(x2, e_w[...]) + e_b[...], e_g[...], e_be[...])
    beta_p = (b_wq, b_bq, b_wkv, b_bkv, b_wo, b_bo, b_g1, b_be1,
              b_wi, b_bi, b_w2, b_b2, b_g2, b_be2)
    tcr2 = _encoder_block(emb, emb, neg_t, B2, S_TCR, S_TCR, beta_p)   # (B2*S_TCR, D)

    # ---- Encoder_pMHC_Bilstm: 2-layer LSTM (fused i,f,g,o gates) + LayerNorm --
    # TODO(synk): implemented as a 2-layer *unidirectional* LSTM (as in the
    # previous version); if the reference uses bidirectional=True the hidden
    # concatenation / output dim would differ.
    xp3 = x_pep_ref[...]                                               # (BS, S_PEP, F)
    valid_p = (jnp.sum(jnp.abs(xp3), axis=-1, keepdims=True)
               != 0.0).astype(jnp.float32)                             # (BS, S_PEP, 1)
    # hoisted layer-1 input projection: one wide matmul for all timesteps
    xg1 = _mm(xp3.reshape(BS * S_PEP, FIN_PEP), l_wih1[...]) + l_b1[...]   # (BS*S, 4D)
    whh1 = l_whh1[...]; wih2 = l_wih2[...]; whh2 = l_whh2[...]
    b2g = l_b2[...]; lg = l_g[...]; lbe = l_be[...]

    def _gates(z, c):                                   # z: (BS, 4D) pre-activations
        i = jax.nn.sigmoid(z[:, 0:D])
        f = jax.nn.sigmoid(z[:, D:2 * D])
        g = jnp.tanh(z[:, 2 * D:3 * D])
        o = jax.nn.sigmoid(z[:, 3 * D:4 * D])
        c_new = f * c + i * g
        return o * jnp.tanh(c_new), c_new

    zero = jnp.zeros((BS, D), jnp.float32)
    h1, c1, h2, c2 = zero, zero, zero, zero
    ys = []
    for t in range(S_PEP):                              # static unroll: serial recurrence
        xt = jnp.concatenate(
            [xg1[b * S_PEP + t:b * S_PEP + t + 1, :] for b in range(BS)], axis=0)
        h1, c1 = _gates(xt + _mm(h1, whh1), c1)
        h2, c2 = _gates(_mm(h1, wih2) + _mm(h2, whh2) + b2g, c2)
        ys.append(_layernorm(h2, lg, lbe))
    # assemble batch-major (BS*S_PEP, D) rows from the per-step (BS, D) outputs
    pep2 = jnp.concatenate(
        [jnp.concatenate([y[b:b + 1, :] for y in ys], axis=0) for b in range(BS)],
        axis=0)                                                        # (BS*S_PEP, D)

    # ---- Cross_attention_encoder: queries = pMHC (duplicated), K/V = TCR ------
    pep2x = jnp.concatenate([pep2, pep2], axis=0)                      # (B2*S_PEP, D)
    fusion_p = (f_wq, f_bq, f_wkv, f_bkv, f_wo, f_bo, f_g1, f_be1,
                f_wi, f_bi, f_w2, f_b2, f_g2, f_be2)
    fused2 = _encoder_block(pep2x, tcr2, neg_t, B2, S_PEP, S_TCR, fusion_p)

    # ---- Attention_pooler: zero padded rows, mean over seq, Linear, Tanh ------
    fused3 = fused2.reshape(B2, S_PEP, D)
    valid2 = jnp.concatenate([valid_p, valid_p], axis=0)               # (B2, S_PEP, 1)
    cnt = jnp.maximum(jnp.sum(valid2, axis=1), 1.0)                    # guard all-pad /0
    pooled = jnp.sum(fused3 * valid2, axis=1) * pl.reciprocal(cnt, approx=True)
    hid = jnp.tanh(_mm(pooled, p_w[...]) + p_b[...])                   # (B2, D)

    # ---- ptm head MLP + cross-entropy (targets: 1 = real pair, 0 = background)
    z1 = jnp.maximum(_mm(hid, h_w1[...]) + h_b1[...], 0.0)
    z2 = jnp.maximum(_mm(z1, h_w2[...]) + h_b2[...], 0.0)
    logits = _mm(z2, h_w3[...])                                        # (B2, 2)
    m = jnp.max(logits, axis=-1, keepdims=True)
    lse = m + jnp.log(jnp.sum(jnp.exp(logits - m), axis=-1, keepdims=True))
    picked = jnp.concatenate([logits[0:BS, 1:2], logits[BS:B2, 0:1]], axis=0)
    o_ref[...] = jnp.sum(lse - picked, axis=0, keepdims=True) * (1.0 / B2)


# ----------------------- standalone Attention_pooler -----------------------

def attention_pooler_kernel(x_ref, valid_ref, w_ref, b_ref, o_ref):
    x = x_ref[...]                                        # (bs, s, d_in)
    valid = valid_ref[...]                                # (bs, s, 1): 1 real / 0 pad
    cnt = jnp.maximum(jnp.sum(valid, axis=1), 1.0)        # (bs, 1)
    pooled = jnp.sum(x * valid, axis=1) * pl.reciprocal(cnt, approx=True)
    o_ref[...] = jnp.tanh(
        jnp.dot(pooled, w_ref[...], preferred_element_type=jnp.float32) + b_ref[...])


def _const_spec(shape):
    nd = len(shape)
    return pl.BlockSpec(shape, lambda *_: (0,) * nd)


def attention_pooler(p, input_data, mask):
    """Attention_pooler.forward: input_data[mask]=0; masked mean over seq; Linear; Tanh."""
    bs, s, _ = input_data.shape
    out_dim = p['w'].shape[1]
    valid = (~mask).astype(jnp.float32)[:, :, None]
    args = [input_data, valid, p['w'], p['b']]
    return pl.pallas_call(
        attention_pooler_kernel,
        out_shape=jax.ShapeDtypeStruct((bs, out_dim), jnp.float32),
        grid=(1,),
        in_specs=[_const_spec(a.shape) for a in args],
        out_specs=_const_spec((bs, out_dim)),
        compiler_params=pltpu.CompilerParams(dimension_semantics=("arbitrary",)),
    )(*args)


def attention_pooler_ref(p, input_data, mask):
    valid = (~mask).astype(jnp.float32)[:, :, None]
    pooled = jnp.sum(input_data * valid, axis=1) / jnp.maximum(jnp.sum(valid, axis=1), 1.0)
    return jnp.tanh(pooled @ p['w'] + p['b'])


# ------------------------------- model wrapper -----------------------------

_ATTN_KEYS = ['wq', 'bq', 'wkv', 'bkv', 'wo', 'bo', 'g1', 'be1',
              'wi', 'bi', 'w2', 'b2', 'g2', 'be2']


def _flat_params(params):
    e, b, f = params['emb'], params['beta'], params['fusion']
    l, po, h = params['lstm'], params['pooler'], params['head']
    return ([e['w'], e['b'], e['g'], e['be']]
            + [b[k] for k in _ATTN_KEYS]
            + [f[k] for k in _ATTN_KEYS]
            + [l['wih1'], l['whh1'], l['b1'], l['wih2'], l['whh2'], l['b2'],
               l['g'], l['be']]
            + [po['w'], po['b']]
            + [h['w1'], h['b1'], h['w2'], h['b2'], h['w3']])


def unitcr_forward(params, x_tcr, x_pep, bg_tcr):
    # NOTE: encoderpMHC_embedding is computed in the PyTorch forward but never used;
    # Cross_attention_encoder_layer.self_attention_layer(value, mask) is dead code.
    args = [x_tcr, bg_tcr, x_pep] + _flat_params(params)
    out = pl.pallas_call(
        fused_kernel,
        out_shape=jax.ShapeDtypeStruct((1, 1), jnp.float32),
        grid=(1,),
        in_specs=[_const_spec(a.shape) for a in args],
        out_specs=_const_spec((1, 1)),
        compiler_params=pltpu.CompilerParams(
            dimension_semantics=("arbitrary",),      # single TC; don't shard a 2-elem batch
            vmem_limit_bytes=32 * 1024 * 1024),      # footprint is ~200 KB, fits every gen
    )(*args)
    return out[0, 0]


# ------------------------- deterministic parameters ------------------------

def _lin(key, fin, fout, bias=True):
    k1, k2 = jax.random.split(key)
    w = jax.random.normal(k1, (fin, fout), jnp.float32) * 0.1
    if bias:
        b = jax.random.normal(k2, (1, fout), jnp.float32) * 0.01
        return w, b
    return w


def _attn_block(key, d):
    ks = jax.random.split(key, 5)
    p = {}
    p['wq'], p['bq'] = _lin(ks[0], d, d)
    p['wkv'], p['bkv'] = _lin(ks[1], d, 2 * d)        # packed K,V projection
    p['wo'], p['bo'] = _lin(ks[2], d, d)
    p['g1'], p['be1'] = jnp.ones((1, d)), jnp.zeros((1, d))
    p['wi'], p['bi'] = _lin(ks[3], d, d)
    p['w2'], p['b2'] = _lin(ks[4], d, d)
    p['g2'], p['be2'] = jnp.ones((1, d)), jnp.zeros((1, d))
    return p


def init_params(key):
    ks = jax.random.split(key, 9)
    params = {}
    w, b = _lin(ks[0], FIN_TCR, D)
    params['emb'] = {'w': w, 'b': b, 'g': jnp.ones((1, D)), 'be': jnp.zeros((1, D))}
    params['beta'] = _attn_block(ks[1], D)
    params['fusion'] = _attn_block(ks[2], D)

    def lstm_layer(key, fin):
        k1, k2, k3 = jax.random.split(key, 3)
        wih = jax.random.normal(k1, (fin, 4 * D), jnp.float32) * 0.1   # fused i,f,g,o gates
        whh = jax.random.normal(k2, (D, 4 * D), jnp.float32) * 0.1
        bb = jax.random.normal(k3, (1, 4 * D), jnp.float32) * 0.01     # b_ih + b_hh combined
        return wih, whh, bb

    wih1, whh1, b1 = lstm_layer(ks[3], FIN_PEP)
    wih2, whh2, b2 = lstm_layer(ks[4], D)
    params['lstm'] = {'wih1': wih1, 'whh1': whh1, 'b1': b1,
                      'wih2': wih2, 'whh2': whh2, 'b2': b2,
                      'g': jnp.ones((1, D)), 'be': jnp.zeros((1, D))}

    w, b = _lin(ks[5], D, D)
    params['pooler'] = {'w': w, 'b': b}
    w1, b1h = _lin(ks[6], D, HEAD_H1)
    w2, b2h = _lin(ks[7], HEAD_H1, HEAD_H2)
    w3 = _lin(ks[8], HEAD_H2, 2, bias=False)
    params['head'] = {'w1': w1, 'b1': b1h, 'w2': w2, 'b2': b2h, 'w3': w3}
    return params


# --------------------------------- main ------------------------------------

if __name__ == "__main__":
    key = jax.random.PRNGKey(0)
    pkey, k1, k2, k3 = jax.random.split(key, 4)
    params = init_params(pkey)

    # x = (TCR_beta_encoding, peptide_encoding); BG_TCRs = background TCRs.
    x_tcr = jax.random.normal(k1, (BS, S_TCR, FIN_TCR), jnp.float32)
    x_tcr = x_tcr.at[1, S_TCR - 2:, :].set(0.0)              # padded positions
    x_pep = jax.random.normal(k2, (BS, S_PEP, FIN_PEP), jnp.float32)
    x_pep = x_pep.at[0, S_PEP - 3:, :].set(0.0)
    bg_tcr = jax.random.normal(k3, (BS, S_TCR, FIN_TCR), jnp.float32)
    bg_tcr = bg_tcr.at[:, S_TCR - 1:, :].set(0.0)

    # ---- standalone Attention_pooler (the spec'd module) vs. plain-JAX reference
    pool_in = jax.random.normal(jax.random.PRNGKey(1), (BS, S_PEP, D), jnp.float32)
    pool_mask = jnp.zeros((BS, S_PEP), dtype=bool).at[0, S_PEP - 3:].set(True)
    got = jax.block_until_ready(attention_pooler(params['pooler'], pool_in, pool_mask))
    want = attention_pooler_ref(params['pooler'], pool_in, pool_mask)
    assert got.shape == (BS, D)
    assert bool(jnp.allclose(got, want, rtol=1e-2, atol=1e-2))

    # ---- fully fused UniTCR forward (single pallas_call -> scalar loss) -------
    loss = jax.jit(unitcr_forward)(params, x_tcr, x_pep, bg_tcr)
    loss = jax.block_until_ready(loss)
    assert loss.shape == () and bool(jnp.isfinite(loss))
    print("KERNEL_OK")
</pallas_src>

<mosaic_0001>
module attributes {stable_mosaic.version = 11 : i64} {
  func.func @attention_pooler_kernel(%arg0: i32, %arg1: memref<2x8x32xf32, #tpu.memory_space<vmem>>, %arg2: memref<2x8x1xf32, #tpu.memory_space<vmem>>, %arg3: memref<32x32xf32, #tpu.memory_space<vmem>>, %arg4: memref<1x32xf32, #tpu.memory_space<vmem>>, %arg5: memref<2x32xf32, #tpu.memory_space<vmem>>) attributes {dimension_semantics = [#tpu.dimension_semantics<arbitrary>], iteration_bounds = array<i64: 1>, scalar_prefetch = 0 : i64, scratch_operands = 0 : i64, tpu.core_type = #tpu.core_type<tc>, window_params = [{pipeline_mode = #tpu.pipeline_mode<synchronous>, transform_indices = @transform_0, window_bounds = array<i64: 2, 8, 32>}, {pipeline_mode = #tpu.pipeline_mode<synchronous>, transform_indices = @transform_1, window_bounds = array<i64: 2, 8, 1>}, {pipeline_mode = #tpu.pipeline_mode<synchronous>, transform_indices = @transform_2, window_bounds = array<i64: 32, 32>}, {pipeline_mode = #tpu.pipeline_mode<synchronous>, transform_indices = @transform_3, window_bounds = array<i64: 1, 32>}, {pipeline_mode = #tpu.pipeline_mode<synchronous>, transform_indices = @transform_4, window_bounds = array<i64: 2, 32>}]} {
    %c0 = arith.constant 0 : index
    %c0_0 = arith.constant 0 : index
    %c0_1 = arith.constant 0 : index
    %0 = vector.load %arg1[%c0, %c0_0, %c0_1] : memref<2x8x32xf32, #tpu.memory_space<vmem>>, vector<2x8x32xf32>
    %c0_2 = arith.constant 0 : index
    %c0_3 = arith.constant 0 : index
    %c0_4 = arith.constant 0 : index
    %1 = vector.load %arg2[%c0_2, %c0_3, %c0_4] : memref<2x8x1xf32, #tpu.memory_space<vmem>>, vector<2x8x1xf32>
    %cst = arith.constant dense<0.000000e+00> : vector<2x1xf32>
    %2 = vector.multi_reduction <add>, %1, %cst [1] : vector<2x8x1xf32> to vector<2x1xf32>
    %cst_5 = arith.constant 1.000000e+00 : f32
    %3 = vector.broadcast %cst_5 : f32 to vector<2x1xf32>
    %4 = arith.maximumf %2, %3 : vector<2x1xf32>
    %5 = vector.broadcast %1 : vector<2x8x1xf32> to vector<2x8x32xf32>
    %6 = arith.mulf %0, %5 : vector<2x8x32xf32>
    %cst_6 = arith.constant dense<0.000000e+00> : vector<2x32xf32>
    %7 = vector.multi_reduction <add>, %6, %cst_6 [1] : vector<2x8x32xf32> to vector<2x32xf32>
    %8 = tpu.reciprocal %4 {approx = true} : vector<2x1xf32> -> vector<2x1xf32>
    %9 = vector.broadcast %8 : vector<2x1xf32> to vector<2x32xf32>
    %10 = arith.mulf %7, %9 : vector<2x32xf32>
    %c0_7 = arith.constant 0 : index
    %c0_8 = arith.constant 0 : index
    %11 = vector.load %arg3[%c0_7, %c0_8] : memref<32x32xf32, #tpu.memory_space<vmem>>, vector<32x32xf32>
    %cst_9 = arith.constant dense<0.000000e+00> : vector<2x32xf32>
    %12 = tpu.matmul %10, %11, %cst_9 {dimension_numbers = #tpu.dot_dimension_numbers<[1], [0], [0], [1], [0, 0, 1, 1], [], []>} : vector<2x32xf32>, vector<32x32xf32>, vector<2x32xf32> -> vector<2x32xf32>
    %c0_10 = arith.constant 0 : index
    %c0_11 = arith.constant 0 : index
    %13 = vector.load %arg4[%c0_10, %c0_11] : memref<1x32xf32, #tpu.memory_space<vmem>>, vector<1x32xf32>
    %14 = vector.broadcast %13 : vector<1x32xf32> to vector<2x32xf32>
    %15 = arith.addf %12, %14 : vector<2x32xf32>
    %16 = math.tanh %15 : vector<2x32xf32>
    %c0_12 = arith.constant 0 : index
    %c0_13 = arith.constant 0 : index
    %17 = vector.load %arg5[%c0_12, %c0_13] : memref<2x32xf32, #tpu.memory_space<vmem>>, vector<2x32xf32>
    tpu.vector_store %arg5[%c0_12, %c0_13], %16 {strides = array<i32>} : memref<2x32xf32, #tpu.memory_space<vmem>>, vector<2x32xf32>,
    return
  }
  func.func @transform_0(%arg0: i32) -> (i32, i32, i32) {
    %c0_i32 = arith.constant 0 : i32
    %c0_i32_0 = arith.constant 0 : i32
    %c0_i32_1 = arith.constant 0 : i32
    %c0_i32_2 = arith.constant 0 : i32
    return %c0_i32, %c0_i32_0, %c0_i32_1 : i32, i32, i32
  }
  func.func @transform_1(%arg0: i32) -> (i32, i32, i32) {
    %c0_i32 = arith.constant 0 : i32
    %c0_i32_0 = arith.constant 0 : i32
    %c0_i32_1 = arith.constant 0 : i32
    %c0_i32_2 = arith.constant 0 : i32
    return %c0_i32, %c0_i32_0, %c0_i32_1 : i32, i32, i32
  }
  func.func @transform_2(%arg0: i32) -> (i32, i32) {
    %c0_i32 = arith.constant 0 : i32
    %c0_i32_0 = arith.constant 0 : i32
    %c0_i32_1 = arith.constant 0 : i32
    return %c0_i32, %c0_i32_0 : i32, i32
  }
  func.func @transform_3(%arg0: i32) -> (i32, i32) {
    %c0_i32 = arith.constant 0 : i32
    %c0_i32_0 = arith.constant 0 : i32
    %c0_i32_1 = arith.constant 0 : i32
    return %c0_i32, %c0_i32_0 : i32, i32
  }
  func.func @transform_4(%arg0: i32) -> (i32, i32) {
    %c0_i32 = arith.constant 0 : i32
    %c0_i32_0 = arith.constant 0 : i32
    %c0_i32_1 = arith.constant 0 : i32
    return %c0_i32, %c0_i32_0 : i32, i32
  }
}

</mosaic_0001>

<llo_original>
// kernel: tpu_custom_call.1
$region0: #{tpu_custom_call.1}
  #allocation0 [shape = 'u32[]', space=smem, size = 0x4, offset = 0x4, fixed_abs, tag = 'smem constant byte address 0x4 - core index']
  #allocation1 [shape = 'u32[144,128]{1,0:T(1,128)}', space=vmem, size = 0x12000, scoped, tag = 'internal scratch']
  %s0 = inlined_call_operand.vmem [shape: f32[2,8,32], index: 0, kind: input, shape index: {}]
  %s1 = inlined_call_operand.vmem [shape: f32[2,8,1], index: 1, kind: input, shape index: {}]
  %s2 = inlined_call_operand.hbm [shape: f32[32,32], index: 2, kind: input, shape index: {}]
  %s3 = inlined_call_operand.vmem [shape: f32[1,32], index: 3, kind: input, shape index: {}]
  %s4 = inlined_call_operand.hbm [shape: f32[2,32], index: 4, kind: output, shape index: {}]
  %s5 = sld [smem:[#allocation0]]
  $region30: #{tpu_custom_call.1} parent=0
    _
  %s7 = ssub.s32 1, %s5
  %s8 = scalar_select 0, %s7, %s5
  $region1: #{tpu_custom_call.1} parent=0
    #allocation2 [shape = 'u8[16384]{0}', space=vmem, size = 0x4000, scoped, tag = 'input window, operand 2, single buffered']
    #allocation3 [shape = 's32[1]{0}', space=sflag, size = 0x4, scoped, tag = 'scoped memory for tpu_custom_call.1']
    #allocation4 [shape = 's32[1]{0}', space=sflag, size = 0x4, scoped, tag = 'scoped memory for tpu_custom_call.1']
    #allocation5 [shape = 'u8[1024]{0}', space=vmem, size = 0x400, scoped, tag = 'output window, operand 0, single buffered']
    %9 = vsyncpa [#allocation3], 0
    %10 = vsyncpa [#allocation4], 0
    // Predicated region
    $region2: #{tpu_custom_call.1} parent=1 // pred_check
      _
    $region3: #{tpu_custom_call.1} parent=1 // pred_check_branch
      %12 = sbr.rel (0) target = $region5
    $region4: #{tpu_custom_call.1} parent=1 // pred_region
      _
    $region5: #{tpu_custom_call.1} parent=1 // pred_fallthru
      _
    // Predicated region
    $region6: #{tpu_custom_call.1} parent=1 // pred_check
      _
    $region7: #{tpu_custom_call.1} parent=1 // pred_check_branch
      %14 = sbr.rel (0) target = $region9
    $region8: #{tpu_custom_call.1} parent=1 // pred_region
      _
    $region9: #{tpu_custom_call.1} parent=1 // pred_fallthru
      _
    // Predicated region
    $region10: #{tpu_custom_call.1} parent=1 // pred_check
      _
    $region11: #{tpu_custom_call.1} parent=1 // pred_check_branch
      %16 = sbr.rel (0) target = $region13
    $region12: #{tpu_custom_call.1} parent=1 // pred_region
      %s18 = ssub.s32 512, 512
      %19 = vsyncadd [#allocation3], %s18
      %s20 = sshll.u32 [#allocation2], 4
      %s21 = int_to_ptr.vmem [resolvable:$true] %s20
      %26 = dma.hbm_to_vmem [thread:$0]  %s2, 512, %s21, [#allocation3], 128, 128, 8
    $region13: #{tpu_custom_call.1} parent=1 // pred_fallthru
      _
    // Predicated region
    $region14: #{tpu_custom_call.1} parent=1 // pred_check
      _
    $region15: #{tpu_custom_call.1} parent=1 // pred_check_branch
      %28 = sbr.rel (0) target = $region17
    $region16: #{tpu_custom_call.1} parent=1 // pred_region
      _
    $region17: #{tpu_custom_call.1} parent=1 // pred_fallthru
      _
    // Predicated region
    $region18: #{tpu_custom_call.1} parent=1 // pred_check
      _
    $region19: #{tpu_custom_call.1} parent=1 // pred_check_branch
      %30 = sbr.rel (0) target = $region21
    $region20: #{tpu_custom_call.1} parent=1 // pred_region
      %31 = dma.done [#allocation3], 512
    $region21: #{tpu_custom_call.1} parent=1 // pred_fallthru
      _
    %v32 = vld [vmem:[%s0] sm:$0xff]
    %v33 = vld [vmem:[%s0 + $0x8] sm:$0xff]
    %v34 = vld [vmem:[%s1] sm:$0xff]
    %v35 = vld [vmem:[%s1 + $0x8] sm:$0xff]
    %vm36 = vcmask 7168
    %v37 = vsel %vm36, %v34, 0.0
    %v38 = vrot.slane %v37, 4
    %v39 = vadd.f32 %v37, %v38
    %v40 = vrot.slane %v39, 2
    %v41 = vadd.f32 %v39, %v40
    %v42 = vrot.slane %v41, 1
    %v43 = vadd.f32 %v41, %v42
    %v44 = vsel %vm36, %v35, 0.0
    %v45 = vrot.slane %v44, 4
    %v46 = vadd.f32 %v44, %v45
    %v47 = vrot.slane %v46, 2
    %v48 = vadd.f32 %v46, %v47
    %v49 = vrot.slane %v48, 1
    %v50 = vadd.f32 %v48, %v49
    %v51 = vmax.f32 %v43, 1.0
    %v52 = vmax.f32 %v50, 1.0
    %54 = vset.pattern.permute.xlu0 0
    %55 = vperm.xlu0 %54, %v34
    %v56 = vpop.permute.xlu0 %55
    %59 = vset.pattern.permute.xlu0 0
    %60 = vperm.xlu0 %59, %v35
    %v61 = vpop.permute.xlu0 %60
    %v63 = vmul.f32 %v32, %v56
    %v64 = vmul.f32 %v33, %v61
    %vm65 = vcmask 261120
    %v66 = vsel %vm65, %v63, 0.0
    %v67 = vrot.slane %v66, 4
    %v68 = vadd.f32 %v66, %v67
    %v69 = vrot.slane %v68, 2
    %v70 = vadd.f32 %v68, %v69
    %v71 = vrot.slane %v70, 1
    %v72 = vadd.f32 %v70, %v71
    %v73 = vsel %vm65, %v64, 0.0
    %v74 = vrot.slane %v73, 4
    %v75 = vadd.f32 %v73, %v74
    %v76 = vrot.slane %v75, 2
    %v77 = vadd.f32 %v75, %v76
    %v78 = vrot.slane %v77, 1
    %v79 = vadd.f32 %v77, %v78
    %v80 = vrcp.pop %v51
    %v81 = vrcp.pop %v52
    %83 = vset.pattern.permute.xlu0 0
    %84 = vperm.xlu0 %83, %v80
    %v85 = vpop.permute.xlu0 %84
    %88 = vset.pattern.permute.xlu0 0
    %89 = vperm.xlu0 %88, %v81
    %v90 = vpop.permute.xlu0 %89
    %v92 = vmul.f32 %v72, %v85
    %v93 = vmul.f32 %v79, %v90
    %v94 = vld [vmem:[#allocation2] sm:$0xff]
    %v95 = vld [vmem:[#allocation2 + $0x8] sm:$0xff]
    %v96 = vld [vmem:[#allocation2 + $0x10] sm:$0xff]
    %v97 = vld [vmem:[#allocation2 + $0x18] sm:$0xff]
    %v98 = vld [vmem:[%s3] sm:$0x1]
    %v100 = vlaneseq
    %v101 = vshrl.u32 %v100, 7
    %v102 = vsub.s32 0, %v101
    %v103 = vrot.slane %v98, %v102
    %vm107 = vcmask 1041409
    %v108 = vsel %vm107, %v93, %v92
    %v109 = vsel %vm65, %v108, 0
    %111 = vmatprep.subr.mxu0 0.0
    %112 = vmatpush1.msra.mxu0 %v94
    %113 = vmatprep.subr.mxu0 0.0
    %114 = vmatpush1.msra.mxu0 %v95
    %115 = vmatprep.subr.mxu0 0.0
    %116 = vmatpush1.msra.mxu0 %v96
    %117 = vmatprep.subr.mxu0 0.0
    %118 = vmatpush1.msra.mxu0 %v97
    %119 = vmatprep.subr.mxu0 0.0
    %120 = vmatpush1.msra.mxu0 0.0
    %121 = vmatprep.subr.mxu0 0.0
    %122 = vmatpush1.msra.mxu0 0.0
    %123 = vmatprep.subr.mxu0 0.0
    %124 = vmatpush1.msra.mxu0 0.0
    %125 = vmatprep.subr.mxu0 0.0
    %126 = vmatpush1.msra.mxu0 0.0
    %127 = vmatprep.subr.mxu0 0.0
    %128 = vmatpush1.msra.mxu0 0.0
    %129 = vmatprep.subr.mxu0 0.0
    %130 = vmatpush1.msra.mxu0 0.0
    %131 = vmatprep.subr.mxu0 0.0
    %132 = vmatpush1.msra.mxu0 0.0
    %133 = vmatprep.subr.mxu0 0.0
    %134 = vmatpush1.msra.mxu0 0.0
    %135 = vmatprep.subr.mxu0 0.0
    %136 = vmatpush1.msra.mxu0 0.0
    %137 = vmatprep.subr.mxu0 0.0
    %138 = vmatpush1.msra.mxu0 0.0
    %139 = vmatprep.subr.mxu0 0.0
    %140 = vmatpush1.msra.mxu0 0.0
    %141 = vmatprep.subr.mxu0 0.0
    %142 = vmatpush1.msra.mxu0 0.0
    %143 = vmatprep.subr.mxu0 0.0
    %144 = vmatpush1.msra.mxu0 0.0
    %145 = vmatprep.subr.mxu0 0.0
    %146 = vmatpush1.msra.mxu0 0.0
    %147 = vmatprep.subr.mxu0 0.0
    %148 = vmatpush1.msra.mxu0 0.0
    %149 = vmatprep.subr.mxu0 0.0
    %150 = vmatpush1.msra.mxu0 0.0
    %151 = vmatprep.subr.mxu0 0.0
    %152 = vmatpush1.msra.mxu0 0.0
    %153 = vmatprep.subr.mxu0 0.0
    %154 = vmatpush1.msra.mxu0 0.0
    %155 = vmatprep.subr.mxu0 0.0
    %156 = vmatpush1.msra.mxu0 0.0
    %157 = vmatprep.subr.mxu0 0.0
    %158 = vmatpush1.msra.mxu0 0.0
    %159 = vmatprep.subr.mxu0 0.0
    %160 = vmatpush1.msra.mxu0 0.0
    %161 = vmatprep.subr.mxu0 0.0
    %162 = vmatpush1.msra.mxu0 0.0
    %163 = vmatprep.subr.mxu0 0.0
    %164 = vmatpush1.msra.mxu0 0.0
    %165 = vmatprep.subr.mxu0 0.0
    %166 = vmatpush1.msra.mxu0 0.0
    %167 = vmatprep.subr.mxu0 0.0
    %168 = vmatpush1.msra.mxu0 0.0
    %169 = vmatprep.subr.mxu0 0.0
    %170 = vmatpush1.msra.mxu0 0.0
    %171 = vmatprep.subr.mxu0 0.0
    %172 = vmatpush1.msra.mxu0 0.0
    %173 = vmatprep.subr.mxu0 0.0
    %174 = vmatpush1.msra.mxu0 0.0
    %175 = vmatprep.mubr.f32.mxu0 0.0
    %176 = vmatmul.mubr.f32.gmra.mrb[0].mxu0 %v109
    %v177 = vpop.f32.mrb[0].mxu0
    %v178 = vadd.f32 %v103, %v177
    %v179 = vpop.f32.mrb[0].mxu0
    %180 = vdwg.mxu0
    %v181 = vtanh.pop %v178
    %vm182 = vcmask 254976
    %183 = vst.msk [vmem:[#allocation5] sm:$0x3] %vm182, %v181
    // Predicated region
    $region22: #{tpu_custom_call.1} parent=1 // pred_check
      _
    $region23: #{tpu_custom_call.1} parent=1 // pred_check_branch
      %185 = sbr.rel (0) target = $region25
    $region24: #{tpu_custom_call.1} parent=1 // pred_region
      %s187 = ssub.s32 32, 32
      %188 = vsyncadd [#allocation4], %s187
      %s190 = sshll.u32 [#allocation5], 4
      %s191 = int_to_ptr.vmem [resolvable:$true] %s190
      %193 = dma.vmem_to_hbm [thread:$0]  %s191, 32, %s4, [#allocation4]
    $region25: #{tpu_custom_call.1} parent=1 // pred_fallthru
      _
    // Predicated region
    $region26: #{tpu_custom_call.1} parent=1 // pred_check
      _
    $region27: #{tpu_custom_call.1} parent=1 // pred_check_branch
      %195 = sbr.rel (0) target = $region29
    $region28: #{tpu_custom_call.1} parent=1 // pred_region
      %196 = dma.done [#allocation4], 32
    $region29: #{tpu_custom_call.1} parent=1 // pred_fallthru
      _
    %197 = vsyncpa [#allocation3], 1
    %198 = vsyncpa [#allocation4], 1

</llo_original>
